<compile_context>
chip_gen: v6e
topology: v6e:2x2x1
jax: 0.10.0
libtpu: 0.0.40
codegen_flags: <defaults>
</compile_context>

<pallas_src>
import functools

import jax
import jax.numpy as jnp
from jax import lax
from jax.experimental import pallas as pl
from jax.experimental.pallas import tpu as pltpu


def _round_up(x, m):
    return (x + m - 1) // m * m


def _choose_seq_tile(s, hp, budget_bytes=40 * 1024 * 1024):
    """Largest seq tile that divides S, is a multiple of 8, and fits the budget."""
    # ~10 live (TS, Hp) f32 tiles: state/time/out double-buffered + loop carries.
    max_rows = max(8, budget_bytes // (10 * hp * 4))
    candidates = [c for c in range(8, s + 1, 8) if s % c == 0 and c <= max_rows]
    return max(candidates) if candidates else s


def _vmem_limit_bytes(ts, hp, max_hop):
    f32 = 4
    streams = 3 * 2 * ts * hp * f32                        # state/time/out, 2 bufs
    weights = 2 * (hp * hp + 3 * hp + max_hop * hp) * f32  # wfn/wp/bfn/pos
    carries = 3 * ts * hp * f32 + 8 * ts * f32
    est = streams + weights + carries
    return int(min(48 * 1024 * 1024, max(2 * est, 16 * 1024 * 1024)))


def act_kernel(state0_ref, time_ref, pos_ref, wp_ref, bp_ref, wfn_ref,
               bfn_ref, out_ref, *, max_hop, threshold, transition_dtype):
    """ACT loop for one (batch row, seq tile) block.

    state0_ref : (1, TS, Hp)  initial state tile
    time_ref   : (TS, Hp)     time_enc rows for this seq tile (shared across batch)
    pos_ref    : (MH, Hp)     pos_enc[0]   (one row per ACT step)
    wp_ref     : (1, Hp)      halting-probability weight, lane-dense row (p.weight)
    bp_ref     : (1, 1)       halting-probability bias (SMEM scalar)
    wfn_ref    : (Hp, Hp)     dense transition weight
    bfn_ref    : (1, Hp)      dense transition bias
    out_ref    : (1, TS, Hp)  previous_state (the ACT output)
    """
    ts, hp = state0_ref.shape[1], state0_ref.shape[2]

    # Hoisted loads / casts (loop-invariant).
    time_e = time_ref[...]                       # (TS, Hp)
    wp_row = wp_ref[...]                         # (1, Hp)
    bp = bp_ref[0, 0]                            # scalar, read from SMEM
    wfn = wfn_ref[...].astype(transition_dtype)  # (Hp, Hp)
    bfn = bfn_ref[...]                           # (1, Hp)

    def body(step, carry):
        state, halting, remainders, n_updates, prev = carry

        # state = state + time_enc[:, :S, :] + pos_enc[:, step, :]
        st = state + time_e
        st = st + pos_ref[pl.ds(step, 1), :]     # (1, Hp) broadcast over rows

        # p = sigmoid(Linear(state)) -> (TS, 1)
        # VPU multiply + cross-lane reduce; avoids an N=1 MXU matmul per hop.
        logits = jnp.sum(st * wp_row, axis=-1, keepdims=True) + bp
        p = jax.nn.sigmoid(logits)

        # Halting bookkeeping (exact transcription of the reference; f32).
        sr0 = (halting < 1.0).astype(jnp.float32)
        cond = halting + p * sr0
        new_halted = (cond > threshold).astype(jnp.float32) * sr0
        sr = (cond <= threshold).astype(jnp.float32) * sr0
        halting = halting + p * sr
        remainders = remainders + new_halted * (1.0 - halting)
        halting = halting + new_halted * remainders
        n_updates = n_updates + sr + new_halted
        update_weights = p * sr + new_halted * remainders    # (TS, 1)

        # state = fn(state)   (dense transition, MXU, f32 accumulation).
        new_state = jnp.dot(st.astype(transition_dtype), wfn,
                            preferred_element_type=jnp.float32) + bfn

        # previous_state = state*w + previous_state*(1-w)
        prev = new_state * update_weights + prev * (1.0 - update_weights)
        return (new_state, halting, remainders, n_updates, prev)

    init = (
        state0_ref[0],                            # (TS, Hp)
        jnp.zeros((ts, 1), jnp.float32),          # halting_probability
        jnp.zeros((ts, 1), jnp.float32),          # remainders
        jnp.zeros((ts, 1), jnp.float32),          # n_updates
        jnp.zeros((ts, hp), jnp.float32),         # previous_state
    )
    # max_hop is a small static int; running all hops is a no-op after halting,
    # so a fully-unrolled fixed-trip loop reproduces the data-dependent while.
    final = lax.fori_loop(0, max_hop, body, init, unroll=True)
    out_ref[0] = final[4]


def act_basic(state, inputs, time_enc, pos_enc, params, max_hop,
              threshold=1.0 - 0.1, transition_dtype=jnp.float32):
    """Wrapper: pad H to a lane-dense multiple of 128 and tile rows on a grid."""
    b, s, h = inputs.shape
    wp, bp, wfn, bfn = params

    hp = _round_up(h, 128)
    ph = hp - h
    f32 = jnp.float32

    # Zero-padding the extra lanes of every operand keeps the result exact:
    # padded lanes of state/logits/new_state stay identically zero.
    state_p = jnp.pad(state.astype(f32), ((0, 0), (0, 0), (0, ph)))
    time_p = jnp.pad(time_enc[0, :s, :].astype(f32), ((0, 0), (0, ph)))      # (S, Hp)
    pos_p = jnp.pad(pos_enc[0, :max_hop, :].astype(f32), ((0, 0), (0, ph)))  # (MH, Hp)
    wp_row = jnp.pad(wp.astype(f32).T, ((0, 0), (0, ph)))                    # (1, Hp)
    bp_s = bp.astype(f32).reshape(1, 1)                                      # SMEM scalar
    wfn_p = jnp.pad(wfn.astype(f32), ((0, ph), (0, ph)))                     # (Hp, Hp)
    bfn_p = jnp.pad(bfn.astype(f32), ((0, 0), (0, ph)))                      # (1, Hp)

    ts = _choose_seq_tile(s, hp)
    grid = (b, s // ts)

    kernel = functools.partial(act_kernel, max_hop=max_hop, threshold=threshold,
                               transition_dtype=transition_dtype)
    out = pl.pallas_call(
        kernel,
        out_shape=jax.ShapeDtypeStruct((b, s, hp), jnp.float32),
        grid_spec=pltpu.PrefetchScalarGridSpec(
            num_scalar_prefetch=0,
            grid=grid,
            in_specs=[
                pl.BlockSpec((1, ts, hp), lambda bi, si: (bi, si, 0)),    # state
                pl.BlockSpec((ts, hp), lambda bi, si: (si, 0)),           # time_enc
                pl.BlockSpec((max_hop, hp), lambda bi, si: (0, 0)),       # pos_enc
                pl.BlockSpec((1, hp), lambda bi, si: (0, 0)),             # wp row
                pl.BlockSpec(memory_space=pltpu.MemorySpace.SMEM),        # bp
                pl.BlockSpec((hp, hp), lambda bi, si: (0, 0)),            # wfn
                pl.BlockSpec((1, hp), lambda bi, si: (0, 0)),             # bfn
            ],
            out_specs=pl.BlockSpec((1, ts, hp), lambda bi, si: (bi, si, 0)),
        ),
        compiler_params=pltpu.CompilerParams(
            dimension_semantics=("parallel", "parallel"),
            vmem_limit_bytes=_vmem_limit_bytes(ts, hp, max_hop),
        ),
    )(state_p, time_p, pos_p, wp_row, bp_s, wfn_p, bfn_p)

    return out[..., :h] if ph else out


def act_basic_ref(state, inputs, time_enc, pos_enc, params, max_hop,
                  threshold=1.0 - 0.1):
    """Pure-JAX reference (same fixed-step formulation) for verification."""
    b, s, h = inputs.shape
    wp, bp, wfn, bfn = params
    halting = jnp.zeros((b, s))
    remainders = jnp.zeros((b, s))
    n_updates = jnp.zeros((b, s))
    prev = jnp.zeros_like(inputs)
    for step in range(max_hop):
        state = state + time_enc[:, :s, :]
        state = state + pos_enc[:, step, :][:, None, :]
        p = jax.nn.sigmoid(jnp.einsum('bsh,ho->bso', state, wp)[..., 0]
                           + bp[0, 0])
        sr0 = (halting < 1.0).astype(jnp.float32)
        cond = halting + p * sr0
        new_halted = (cond > threshold).astype(jnp.float32) * sr0
        sr = (cond <= threshold).astype(jnp.float32) * sr0
        halting = halting + p * sr
        remainders = remainders + new_halted * (1.0 - halting)
        halting = halting + new_halted * remainders
        n_updates = n_updates + sr + new_halted
        uw = p * sr + new_halted * remainders
        state = jnp.einsum('bsh,hk->bsk', state, wfn) + bfn[0]
        prev = state * uw[..., None] + prev * (1.0 - uw[..., None])
    return prev


if __name__ == "__main__":
    B, S, H = 2, 8, 32
    MAX_HOP = 4

    key = jax.random.PRNGKey(0)
    k_state, k_inp, k_time, k_pos, k_wp, k_wfn, k_bfn = jax.random.split(key, 7)

    state = jax.random.normal(k_state, (B, S, H), dtype=jnp.float32)
    inputs = jax.random.normal(k_inp, (B, S, H), dtype=jnp.float32)
    time_enc = 0.1 * jax.random.normal(k_time, (1, S, H), dtype=jnp.float32)
    pos_enc = 0.1 * jax.random.normal(k_pos, (1, MAX_HOP, H), dtype=jnp.float32)

    # Parameters (deterministic, matching nn.Linear(hidden_size, 1) with
    # bias filled to 1, plus a dense transition fn).
    wp = 0.1 * jax.random.normal(k_wp, (H, 1), dtype=jnp.float32)
    bp = jnp.ones((1, 1), dtype=jnp.float32)                 # p.bias.fill_(1)
    wfn = (1.0 / jnp.sqrt(H)) * jax.random.normal(k_wfn, (H, H),
                                                  dtype=jnp.float32)
    bfn = 0.01 * jax.random.normal(k_bfn, (1, H), dtype=jnp.float32)
    params = (wp, bp, wfn, bfn)

    out = act_basic(state, inputs, time_enc, pos_enc, params, MAX_HOP)
    out = jax.block_until_ready(out)

    ref = act_basic_ref(state, inputs, time_enc, pos_enc, params, MAX_HOP)
    assert out.shape == (B, S, H)
    assert jnp.allclose(out, ref, rtol=1e-3, atol=1e-4), "mismatch vs JAX ref"

    print("KERNEL_OK")
</pallas_src>

<mosaic_0001>
module attributes {stable_mosaic.version = 11 : i64} {
  func.func @act_kernel(%arg0: i32, %arg1: i32, %arg2: memref<1x8x128xf32, #tpu.memory_space<vmem>>, %arg3: memref<8x128xf32, #tpu.memory_space<vmem>>, %arg4: memref<4x128xf32, #tpu.memory_space<vmem>>, %arg5: memref<1x128xf32, #tpu.memory_space<vmem>>, %arg6: memref<1x1xf32, #tpu.memory_space<smem>>, %arg7: memref<128x128xf32, #tpu.memory_space<vmem>>, %arg8: memref<1x128xf32, #tpu.memory_space<vmem>>, %arg9: memref<1x8x128xf32, #tpu.memory_space<vmem>>) attributes {dimension_semantics = [#tpu.dimension_semantics<parallel>, #tpu.dimension_semantics<parallel>], iteration_bounds = array<i64: 2, 1>, scalar_prefetch = 0 : i64, scratch_operands = 0 : i64, tpu.core_type = #tpu.core_type<tc>, window_params = [{transform_indices = @transform_0, window_bounds = array<i64: 1, 8, 128>}, {transform_indices = @transform_1, window_bounds = array<i64: 8, 128>}, {pipeline_mode = #tpu.pipeline_mode<synchronous>, transform_indices = @transform_2, window_bounds = array<i64: 4, 128>}, {pipeline_mode = #tpu.pipeline_mode<synchronous>, transform_indices = @transform_3, window_bounds = array<i64: 1, 128>}, {transform_indices = @transform_4, window_bounds = array<i64: 1, 1>}, {pipeline_mode = #tpu.pipeline_mode<synchronous>, transform_indices = @transform_5, window_bounds = array<i64: 128, 128>}, {pipeline_mode = #tpu.pipeline_mode<synchronous>, transform_indices = @transform_6, window_bounds = array<i64: 1, 128>}, {transform_indices = @transform_7, window_bounds = array<i64: 1, 8, 128>}]} {
    %c0 = arith.constant 0 : index
    %c0_0 = arith.constant 0 : index
    %0 = vector.load %arg3[%c0, %c0_0] : memref<8x128xf32, #tpu.memory_space<vmem>>, vector<8x128xf32>
    %c0_1 = arith.constant 0 : index
    %c0_2 = arith.constant 0 : index
    %1 = vector.load %arg5[%c0_1, %c0_2] : memref<1x128xf32, #tpu.memory_space<vmem>>, vector<1x128xf32>
    %c0_3 = arith.constant 0 : index
    %c0_4 = arith.constant 0 : index
    %2 = memref.load %arg6[%c0_3, %c0_4] : memref<1x1xf32, #tpu.memory_space<smem>>
    %c0_5 = arith.constant 0 : index
    %c0_6 = arith.constant 0 : index
    %3 = vector.load %arg7[%c0_5, %c0_6] : memref<128x128xf32, #tpu.memory_space<vmem>>, vector<128x128xf32>
    %c0_7 = arith.constant 0 : index
    %c0_8 = arith.constant 0 : index
    %4 = vector.load %arg8[%c0_7, %c0_8] : memref<1x128xf32, #tpu.memory_space<vmem>>, vector<1x128xf32>
    %c0_9 = arith.constant 0 : index
    %c0_10 = arith.constant 0 : index
    %c0_11 = arith.constant 0 : index
    %5 = vector.load %arg2[%c0_9, %c0_10, %c0_11] : memref<1x8x128xf32, #tpu.memory_space<vmem>>, vector<1x8x128xf32>
    %6 = vector.shape_cast %5 : vector<1x8x128xf32> to vector<8x128xf32>
    %cst = arith.constant 0.000000e+00 : f32
    %7 = vector.broadcast %cst : f32 to vector<8x1xf32>
    %cst_12 = arith.constant 0.000000e+00 : f32
    %8 = vector.broadcast %cst_12 : f32 to vector<8x1xf32>
    %cst_13 = arith.constant 0.000000e+00 : f32
    %9 = vector.broadcast %cst_13 : f32 to vector<8x128xf32>
    %c0_i32 = arith.constant 0 : i32
    %10 = arith.addf %6, %0 : vector<8x128xf32>
    %11 = arith.index_cast %c0_i32 : i32 to index
    %c0_14 = arith.constant 0 : index
    %12 = vector.load %arg4[%11, %c0_14] : memref<4x128xf32, #tpu.memory_space<vmem>>, vector<1x128xf32>
    %13 = vector.broadcast %12 : vector<1x128xf32> to vector<8x128xf32>
    %14 = arith.addf %10, %13 : vector<8x128xf32>
    %15 = vector.broadcast %1 : vector<1x128xf32> to vector<8x128xf32>
    %16 = arith.mulf %14, %15 : vector<8x128xf32>
    %cst_15 = arith.constant dense<0.000000e+00> : vector<8xf32>
    %17 = vector.multi_reduction <add>, %16, %cst_15 [1] : vector<8x128xf32> to vector<8xf32>
    %18 = vector.shape_cast %17 : vector<8xf32> to vector<8x1xf32>
    %19 = vector.broadcast %2 : f32 to vector<8x1xf32>
    %20 = arith.addf %18, %19 : vector<8x1xf32>
    %21 = arith.negf %20 : vector<8x1xf32>
    %22 = math.exp %21 : vector<8x1xf32>
    %cst_16 = arith.constant 1.000000e+00 : f32
    %23 = vector.broadcast %cst_16 : f32 to vector<8x1xf32>
    %24 = arith.addf %23, %22 : vector<8x1xf32>
    %25 = arith.divf %23, %24 : vector<8x1xf32>
    %cst_17 = arith.constant 1.000000e+00 : f32
    %26 = vector.broadcast %cst_17 : f32 to vector<8x1xf32>
    %27 = arith.cmpf olt, %7, %26 : vector<8x1xf32>
    %28 = arith.extui %27 : vector<8x1xi1> to vector<8x1xi32>
    %29 = arith.sitofp %28 : vector<8x1xi32> to vector<8x1xf32>
    %30 = arith.mulf %25, %29 : vector<8x1xf32>
    %31 = arith.addf %7, %30 : vector<8x1xf32>
    %cst_18 = arith.constant 0.899999976 : f32
    %32 = vector.broadcast %cst_18 : f32 to vector<8x1xf32>
    %33 = arith.cmpf ogt, %31, %32 : vector<8x1xf32>
    %34 = arith.extui %33 : vector<8x1xi1> to vector<8x1xi32>
    %35 = arith.sitofp %34 : vector<8x1xi32> to vector<8x1xf32>
    %36 = arith.mulf %35, %29 : vector<8x1xf32>
    %cst_19 = arith.constant 0.899999976 : f32
    %37 = vector.broadcast %cst_19 : f32 to vector<8x1xf32>
    %38 = arith.cmpf ole, %31, %37 : vector<8x1xf32>
    %39 = arith.extui %38 : vector<8x1xi1> to vector<8x1xi32>
    %40 = arith.sitofp %39 : vector<8x1xi32> to vector<8x1xf32>
    %41 = arith.mulf %40, %29 : vector<8x1xf32>
    %42 = arith.mulf %25, %41 : vector<8x1xf32>
    %43 = arith.addf %7, %42 : vector<8x1xf32>
    %cst_20 = arith.constant 1.000000e+00 : f32
    %44 = vector.broadcast %cst_20 : f32 to vector<8x1xf32>
    %45 = arith.subf %44, %43 : vector<8x1xf32>
    %46 = arith.mulf %36, %45 : vector<8x1xf32>
    %47 = arith.addf %8, %46 : vector<8x1xf32>
    %48 = arith.mulf %36, %47 : vector<8x1xf32>
    %49 = arith.addf %43, %48 : vector<8x1xf32>
    %50 = arith.mulf %25, %41 : vector<8x1xf32>
    %51 = arith.mulf %36, %47 : vector<8x1xf32>
    %52 = arith.addf %50, %51 : vector<8x1xf32>
    %cst_21 = arith.constant dense<0.000000e+00> : vector<8x128xf32>
    %53 = tpu.matmul %14, %3, %cst_21 {dimension_numbers = #tpu.dot_dimension_numbers<[1], [0], [0], [1], [0, 0, 1, 1], [], []>} : vector<8x128xf32>, vector<128x128xf32>, vector<8x128xf32> -> vector<8x128xf32>
    %54 = vector.broadcast %4 : vector<1x128xf32> to vector<8x128xf32>
    %55 = arith.addf %53, %54 : vector<8x128xf32>
    %56 = vector.broadcast %52 : vector<8x1xf32> to vector<8x128xf32>
    %57 = arith.mulf %55, %56 : vector<8x128xf32>
    %cst_22 = arith.constant 1.000000e+00 : f32
    %58 = vector.broadcast %cst_22 : f32 to vector<8x1xf32>
    %59 = arith.subf %58, %52 : vector<8x1xf32>
    %60 = vector.broadcast %59 : vector<8x1xf32> to vector<8x128xf32>
    %61 = arith.mulf %9, %60 : vector<8x128xf32>
    %62 = arith.addf %57, %61 : vector<8x128xf32>
    %c1_i32 = arith.constant 1 : i32
    %63 = arith.addf %55, %0 : vector<8x128xf32>
    %64 = arith.index_cast %c1_i32 : i32 to index
    %c0_23 = arith.constant 0 : index
    %65 = vector.load %arg4[%64, %c0_23] : memref<4x128xf32, #tpu.memory_space<vmem>>, vector<1x128xf32>
    %66 = vector.broadcast %65 : vector<1x128xf32> to vector<8x128xf32>
    %67 = arith.addf %63, %66 : vector<8x128xf32>
    %68 = vector.broadcast %1 : vector<1x128xf32> to vector<8x128xf32>
    %69 = arith.mulf %67, %68 : vector<8x128xf32>
    %cst_24 = arith.constant dense<0.000000e+00> : vector<8xf32>
    %70 = vector.multi_reduction <add>, %69, %cst_24 [1] : vector<8x128xf32> to vector<8xf32>
    %71 = vector.shape_cast %70 : vector<8xf32> to vector<8x1xf32>
    %72 = vector.broadcast %2 : f32 to vector<8x1xf32>
    %73 = arith.addf %71, %72 : vector<8x1xf32>
    %74 = arith.negf %73 : vector<8x1xf32>
    %75 = math.exp %74 : vector<8x1xf32>
    %cst_25 = arith.constant 1.000000e+00 : f32
    %76 = vector.broadcast %cst_25 : f32 to vector<8x1xf32>
    %77 = arith.addf %76, %75 : vector<8x1xf32>
    %78 = arith.divf %76, %77 : vector<8x1xf32>
    %cst_26 = arith.constant 1.000000e+00 : f32
    %79 = vector.broadcast %cst_26 : f32 to vector<8x1xf32>
    %80 = arith.cmpf olt, %49, %79 : vector<8x1xf32>
    %81 = arith.extui %80 : vector<8x1xi1> to vector<8x1xi32>
    %82 = arith.sitofp %81 : vector<8x1xi32> to vector<8x1xf32>
    %83 = arith.mulf %78, %82 : vector<8x1xf32>
    %84 = arith.addf %49, %83 : vector<8x1xf32>
    %cst_27 = arith.constant 0.899999976 : f32
    %85 = vector.broadcast %cst_27 : f32 to vector<8x1xf32>
    %86 = arith.cmpf ogt, %84, %85 : vector<8x1xf32>
    %87 = arith.extui %86 : vector<8x1xi1> to vector<8x1xi32>
    %88 = arith.sitofp %87 : vector<8x1xi32> to vector<8x1xf32>
    %89 = arith.mulf %88, %82 : vector<8x1xf32>
    %cst_28 = arith.constant 0.899999976 : f32
    %90 = vector.broadcast %cst_28 : f32 to vector<8x1xf32>
    %91 = arith.cmpf ole, %84, %90 : vector<8x1xf32>
    %92 = arith.extui %91 : vector<8x1xi1> to vector<8x1xi32>
    %93 = arith.sitofp %92 : vector<8x1xi32> to vector<8x1xf32>
    %94 = arith.mulf %93, %82 : vector<8x1xf32>
    %95 = arith.mulf %78, %94 : vector<8x1xf32>
    %96 = arith.addf %49, %95 : vector<8x1xf32>
    %cst_29 = arith.constant 1.000000e+00 : f32
    %97 = vector.broadcast %cst_29 : f32 to vector<8x1xf32>
    %98 = arith.subf %97, %96 : vector<8x1xf32>
    %99 = arith.mulf %89, %98 : vector<8x1xf32>
    %100 = arith.addf %47, %99 : vector<8x1xf32>
    %101 = arith.mulf %89, %100 : vector<8x1xf32>
    %102 = arith.addf %96, %101 : vector<8x1xf32>
    %103 = arith.mulf %78, %94 : vector<8x1xf32>
    %104 = arith.mulf %89, %100 : vector<8x1xf32>
    %105 = arith.addf %103, %104 : vector<8x1xf32>
    %cst_30 = arith.constant dense<0.000000e+00> : vector<8x128xf32>
    %106 = tpu.matmul %67, %3, %cst_30 {dimension_numbers = #tpu.dot_dimension_numbers<[1], [0], [0], [1], [0, 0, 1, 1], [], []>} : vector<8x128xf32>, vector<128x128xf32>, vector<8x128xf32> -> vector<8x128xf32>
    %107 = vector.broadcast %4 : vector<1x128xf32> to vector<8x128xf32>
    %108 = arith.addf %106, %107 : vector<8x128xf32>
    %109 = vector.broadcast %105 : vector<8x1xf32> to vector<8x128xf32>
    %110 = arith.mulf %108, %109 : vector<8x128xf32>
    %cst_31 = arith.constant 1.000000e+00 : f32
    %111 = vector.broadcast %cst_31 : f32 to vector<8x1xf32>
    %112 = arith.subf %111, %105 : vector<8x1xf32>
    %113 = vector.broadcast %112 : vector<8x1xf32> to vector<8x128xf32>
    %114 = arith.mulf %62, %113 : vector<8x128xf32>
    %115 = arith.addf %110, %114 : vector<8x128xf32>
    %c2_i32 = arith.constant 2 : i32
    %116 = arith.addf %108, %0 : vector<8x128xf32>
    %117 = arith.index_cast %c2_i32 : i32 to index
    %c0_32 = arith.constant 0 : index
    %118 = vector.load %arg4[%117, %c0_32] : memref<4x128xf32, #tpu.memory_space<vmem>>, vector<1x128xf32>
    %119 = vector.broadcast %118 : vector<1x128xf32> to vector<8x128xf32>
    %120 = arith.addf %116, %119 : vector<8x128xf32>
    %121 = vector.broadcast %1 : vector<1x128xf32> to vector<8x128xf32>
    %122 = arith.mulf %120, %121 : vector<8x128xf32>
    %cst_33 = arith.constant dense<0.000000e+00> : vector<8xf32>
    %123 = vector.multi_reduction <add>, %122, %cst_33 [1] : vector<8x128xf32> to vector<8xf32>
    %124 = vector.shape_cast %123 : vector<8xf32> to vector<8x1xf32>
    %125 = vector.broadcast %2 : f32 to vector<8x1xf32>
    %126 = arith.addf %124, %125 : vector<8x1xf32>
    %127 = arith.negf %126 : vector<8x1xf32>
    %128 = math.exp %127 : vector<8x1xf32>
    %cst_34 = arith.constant 1.000000e+00 : f32
    %129 = vector.broadcast %cst_34 : f32 to vector<8x1xf32>
    %130 = arith.addf %129, %128 : vector<8x1xf32>
    %131 = arith.divf %129, %130 : vector<8x1xf32>
    %cst_35 = arith.constant 1.000000e+00 : f32
    %132 = vector.broadcast %cst_35 : f32 to vector<8x1xf32>
    %133 = arith.cmpf olt, %102, %132 : vector<8x1xf32>
    %134 = arith.extui %133 : vector<8x1xi1> to vector<8x1xi32>
    %135 = arith.sitofp %134 : vector<8x1xi32> to vector<8x1xf32>
    %136 = arith.mulf %131, %135 : vector<8x1xf32>
    %137 = arith.addf %102, %136 : vector<8x1xf32>
    %cst_36 = arith.constant 0.899999976 : f32
    %138 = vector.broadcast %cst_36 : f32 to vector<8x1xf32>
    %139 = arith.cmpf ogt, %137, %138 : vector<8x1xf32>
    %140 = arith.extui %139 : vector<8x1xi1> to vector<8x1xi32>
    %141 = arith.sitofp %140 : vector<8x1xi32> to vector<8x1xf32>
    %142 = arith.mulf %141, %135 : vector<8x1xf32>
    %cst_37 = arith.constant 0.899999976 : f32
    %143 = vector.broadcast %cst_37 : f32 to vector<8x1xf32>
    %144 = arith.cmpf ole, %137, %143 : vector<8x1xf32>
    %145 = arith.extui %144 : vector<8x1xi1> to vector<8x1xi32>
    %146 = arith.sitofp %145 : vector<8x1xi32> to vector<8x1xf32>
    %147 = arith.mulf %146, %135 : vector<8x1xf32>
    %148 = arith.mulf %131, %147 : vector<8x1xf32>
    %149 = arith.addf %102, %148 : vector<8x1xf32>
    %cst_38 = arith.constant 1.000000e+00 : f32
    %150 = vector.broadcast %cst_38 : f32 to vector<8x1xf32>
    %151 = arith.subf %150, %149 : vector<8x1xf32>
    %152 = arith.mulf %142, %151 : vector<8x1xf32>
    %153 = arith.addf %100, %152 : vector<8x1xf32>
    %154 = arith.mulf %142, %153 : vector<8x1xf32>
    %155 = arith.addf %149, %154 : vector<8x1xf32>
    %156 = arith.mulf %131, %147 : vector<8x1xf32>
    %157 = arith.mulf %142, %153 : vector<8x1xf32>
    %158 = arith.addf %156, %157 : vector<8x1xf32>
    %cst_39 = arith.constant dense<0.000000e+00> : vector<8x128xf32>
    %159 = tpu.matmul %120, %3, %cst_39 {dimension_numbers = #tpu.dot_dimension_numbers<[1], [0], [0], [1], [0, 0, 1, 1], [], []>} : vector<8x128xf32>, vector<128x128xf32>, vector<8x128xf32> -> vector<8x128xf32>
    %160 = vector.broadcast %4 : vector<1x128xf32> to vector<8x128xf32>
    %161 = arith.addf %159, %160 : vector<8x128xf32>
    %162 = vector.broadcast %158 : vector<8x1xf32> to vector<8x128xf32>
    %163 = arith.mulf %161, %162 : vector<8x128xf32>
    %cst_40 = arith.constant 1.000000e+00 : f32
    %164 = vector.broadcast %cst_40 : f32 to vector<8x1xf32>
    %165 = arith.subf %164, %158 : vector<8x1xf32>
    %166 = vector.broadcast %165 : vector<8x1xf32> to vector<8x128xf32>
    %167 = arith.mulf %115, %166 : vector<8x128xf32>
    %168 = arith.addf %163, %167 : vector<8x128xf32>
    %c3_i32 = arith.constant 3 : i32
    %169 = arith.addf %161, %0 : vector<8x128xf32>
    %170 = arith.index_cast %c3_i32 : i32 to index
    %c0_41 = arith.constant 0 : index
    %171 = vector.load %arg4[%170, %c0_41] : memref<4x128xf32, #tpu.memory_space<vmem>>, vector<1x128xf32>
    %172 = vector.broadcast %171 : vector<1x128xf32> to vector<8x128xf32>
    %173 = arith.addf %169, %172 : vector<8x128xf32>
    %174 = vector.broadcast %1 : vector<1x128xf32> to vector<8x128xf32>
    %175 = arith.mulf %173, %174 : vector<8x128xf32>
    %cst_42 = arith.constant dense<0.000000e+00> : vector<8xf32>
    %176 = vector.multi_reduction <add>, %175, %cst_42 [1] : vector<8x128xf32> to vector<8xf32>
    %177 = vector.shape_cast %176 : vector<8xf32> to vector<8x1xf32>
    %178 = vector.broadcast %2 : f32 to vector<8x1xf32>
    %179 = arith.addf %177, %178 : vector<8x1xf32>
    %180 = arith.negf %179 : vector<8x1xf32>
    %181 = math.exp %180 : vector<8x1xf32>
    %cst_43 = arith.constant 1.000000e+00 : f32
    %182 = vector.broadcast %cst_43 : f32 to vector<8x1xf32>
    %183 = arith.addf %182, %181 : vector<8x1xf32>
    %184 = arith.divf %182, %183 : vector<8x1xf32>
    %cst_44 = arith.constant 1.000000e+00 : f32
    %185 = vector.broadcast %cst_44 : f32 to vector<8x1xf32>
    %186 = arith.cmpf olt, %155, %185 : vector<8x1xf32>
    %187 = arith.extui %186 : vector<8x1xi1> to vector<8x1xi32>
    %188 = arith.sitofp %187 : vector<8x1xi32> to vector<8x1xf32>
    %189 = arith.mulf %184, %188 : vector<8x1xf32>
    %190 = arith.addf %155, %189 : vector<8x1xf32>
    %cst_45 = arith.constant 0.899999976 : f32
    %191 = vector.broadcast %cst_45 : f32 to vector<8x1xf32>
    %192 = arith.cmpf ogt, %190, %191 : vector<8x1xf32>
    %193 = arith.extui %192 : vector<8x1xi1> to vector<8x1xi32>
    %194 = arith.sitofp %193 : vector<8x1xi32> to vector<8x1xf32>
    %195 = arith.mulf %194, %188 : vector<8x1xf32>
    %cst_46 = arith.constant 0.899999976 : f32
    %196 = vector.broadcast %cst_46 : f32 to vector<8x1xf32>
    %197 = arith.cmpf ole, %190, %196 : vector<8x1xf32>
    %198 = arith.extui %197 : vector<8x1xi1> to vector<8x1xi32>
    %199 = arith.sitofp %198 : vector<8x1xi32> to vector<8x1xf32>
    %200 = arith.mulf %199, %188 : vector<8x1xf32>
    %201 = arith.mulf %184, %200 : vector<8x1xf32>
    %202 = arith.addf %155, %201 : vector<8x1xf32>
    %cst_47 = arith.constant 1.000000e+00 : f32
    %203 = vector.broadcast %cst_47 : f32 to vector<8x1xf32>
    %204 = arith.subf %203, %202 : vector<8x1xf32>
    %205 = arith.mulf %195, %204 : vector<8x1xf32>
    %206 = arith.addf %153, %205 : vector<8x1xf32>
    %207 = arith.mulf %195, %206 : vector<8x1xf32>
    %208 = arith.addf %202, %207 : vector<8x1xf32>
    %209 = arith.mulf %184, %200 : vector<8x1xf32>
    %210 = arith.mulf %195, %206 : vector<8x1xf32>
    %211 = arith.addf %209, %210 : vector<8x1xf32>
    %cst_48 = arith.constant dense<0.000000e+00> : vector<8x128xf32>
    %212 = tpu.matmul %173, %3, %cst_48 {dimension_numbers = #tpu.dot_dimension_numbers<[1], [0], [0], [1], [0, 0, 1, 1], [], []>} : vector<8x128xf32>, vector<128x128xf32>, vector<8x128xf32> -> vector<8x128xf32>
    %213 = vector.broadcast %4 : vector<1x128xf32> to vector<8x128xf32>
    %214 = arith.addf %212, %213 : vector<8x128xf32>
    %215 = vector.broadcast %211 : vector<8x1xf32> to vector<8x128xf32>
    %216 = arith.mulf %214, %215 : vector<8x128xf32>
    %cst_49 = arith.constant 1.000000e+00 : f32
    %217 = vector.broadcast %cst_49 : f32 to vector<8x1xf32>
    %218 = arith.subf %217, %211 : vector<8x1xf32>
    %219 = vector.broadcast %218 : vector<8x1xf32> to vector<8x128xf32>
    %220 = arith.mulf %168, %219 : vector<8x128xf32>
    %221 = arith.addf %216, %220 : vector<8x128xf32>
    %c4_i32 = arith.constant 4 : i32
    %c0_50 = arith.constant 0 : index
    %c0_51 = arith.constant 0 : index
    %c0_52 = arith.constant 0 : index
    %222 = vector.load %arg9[%c0_50, %c0_51, %c0_52] : memref<1x8x128xf32, #tpu.memory_space<vmem>>, vector<1x8x128xf32>
    %223 = vector.shape_cast %222 : vector<1x8x128xf32> to vector<8x128xf32>
    %224 = vector.shape_cast %221 : vector<8x128xf32> to vector<1x8x128xf32>
    tpu.vector_store %arg9[%c0_50, %c0_51, %c0_52], %224 {strides = array<i32>} : memref<1x8x128xf32, #tpu.memory_space<vmem>>, vector<1x8x128xf32>,
    return
  }
  func.func @transform_0(%arg0: i32, %arg1: i32) -> (i32, i32, i32) {
    %c0_i32 = arith.constant 0 : i32
    %c0_i32_0 = arith.constant 0 : i32
    return %arg0, %arg1, %c0_i32 : i32, i32, i32
  }
  func.func @transform_1(%arg0: i32, %arg1: i32) -> (i32, i32) {
    %c0_i32 = arith.constant 0 : i32
    %c0_i32_0 = arith.constant 0 : i32
    return %arg1, %c0_i32 : i32, i32
  }
  func.func @transform_2(%arg0: i32, %arg1: i32) -> (i32, i32) {
    %c0_i32 = arith.constant 0 : i32
    %c0_i32_0 = arith.constant 0 : i32
    %c0_i32_1 = arith.constant 0 : i32
    return %c0_i32, %c0_i32_0 : i32, i32
  }
  func.func @transform_3(%arg0: i32, %arg1: i32) -> (i32, i32) {
    %c0_i32 = arith.constant 0 : i32
    %c0_i32_0 = arith.constant 0 : i32
    %c0_i32_1 = arith.constant 0 : i32
    return %c0_i32, %c0_i32_0 : i32, i32
  }
  func.func @transform_4(%arg0: i32, %arg1: i32) -> (i32, i32) {
    %c0_i32 = arith.constant 0 : i32
    %c0_i32_0 = arith.constant 0 : i32
    %c0_i32_1 = arith.constant 0 : i32
    return %c0_i32, %c0_i32_0 : i32, i32
  }
  func.func @transform_5(%arg0: i32, %arg1: i32) -> (i32, i32) {
    %c0_i32 = arith.constant 0 : i32
    %c0_i32_0 = arith.constant 0 : i32
    %c0_i32_1 = arith.constant 0 : i32
    return %c0_i32, %c0_i32_0 : i32, i32
  }
  func.func @transform_6(%arg0: i32, %arg1: i32) -> (i32, i32) {
    %c0_i32 = arith.constant 0 : i32
    %c0_i32_0 = arith.constant 0 : i32
    %c0_i32_1 = arith.constant 0 : i32
    return %c0_i32, %c0_i32_0 : i32, i32
  }
  func.func @transform_7(%arg0: i32, %arg1: i32) -> (i32, i32, i32) {
    %c0_i32 = arith.constant 0 : i32
    %c0_i32_0 = arith.constant 0 : i32
    return %arg0, %arg1, %c0_i32 : i32, i32, i32
  }
}

</mosaic_0001>

<llo_original>
// kernel: tpu_custom_call.1
$region0: #{tpu_custom_call.1}
  #allocation0 [shape = 'u32[]', space=smem, size = 0x4, offset = 0x4, fixed_abs, tag = 'smem constant byte address 0x4 - core index']
  #allocation1 [shape = 'u32[144,128]{1,0:T(1,128)}', space=vmem, size = 0x12000, scoped, tag = 'internal scratch']
  #allocation2 [shape = 'f32[1,1]{1,0:T(1,128)S(6)}', space=smem, size = 0x200, scoped, tag = 'scoped memory for tpu_custom_call.1']
  %s0 = inlined_call_operand.hbm [shape: f32[2,8,128], index: 0, kind: input, shape index: {}]
  %s1 = inlined_call_operand.hbm [shape: f32[8,128], index: 1, kind: input, shape index: {}]
  %s2 = inlined_call_operand.vmem [shape: f32[4,128], index: 2, kind: input, shape index: {}]
  %s3 = inlined_call_operand.vmem [shape: f32[1,128], index: 3, kind: input, shape index: {}]
  %s4 = inlined_call_operand.<no memory space> [shape: f32[1,1], index: 4, kind: input, shape index: {}]
  %s5 = inlined_call_operand.hbm [shape: f32[128,128], index: 5, kind: input, shape index: {}]
  %s6 = inlined_call_operand.vmem [shape: f32[1,128], index: 6, kind: input, shape index: {}]
  %s7 = inlined_call_operand.hbm [shape: f32[2,8,128], index: 7, kind: output, shape index: {}]
  %s8 = sld [smem:[#allocation0]]
  $region73: #{tpu_custom_call.1} parent=0
    _
  %s10 = ssub.s32 1, %s8
  %s11 = scalar_select 0, %s10, %s8
  %12 = sst [smem:[#allocation2]] %s4
  $region1: #{tpu_custom_call.1} parent=0
    #allocation3 [shape = 'u8[8192]{0}', space=vmem, size = 0x2000, scoped, tag = 'input window, operand 0']
    #allocation4 [shape = 's32[2]{0}', space=sflag, size = 0x8, scoped, tag = 'scoped memory for tpu_custom_call.1']
    #allocation5 [shape = 's32[2]{0}', space=sflag, size = 0x8, scoped, tag = 'scoped memory for tpu_custom_call.1']
    #allocation6 [shape = 'u8[4096]{0}', space=vmem, size = 0x1000, scoped, tag = 'input window, operand 1, single buffered']
    #allocation7 [shape = 's32[1]{0}', space=sflag, size = 0x4, scoped, tag = 'scoped memory for tpu_custom_call.1']
    #allocation8 [shape = 'u8[65536]{0}', space=vmem, size = 0x10000, scoped, tag = 'input window, operand 5, single buffered']
    #allocation9 [shape = 'u8[8192]{0}', space=vmem, size = 0x2000, scoped, tag = 'output window, operand 0']
    %13 = vsyncpa [#allocation4], 0
    %s14 = scalar_lea.sflag [#allocation4], 1
    %15 = vsyncpa %s14, 0
    %16 = vsyncpa [#allocation7], 0
    %17 = vsyncpa [#allocation5], 0
    %s18 = scalar_lea.sflag [#allocation5], 1
    %19 = vsyncpa %s18, 0
    loop: start=0, step=1, limit=4
    $region2: #{tpu_custom_call.1} parent=1 // loop_pre_header
      _
    $region3: #{tpu_custom_call.1} parent=1 // loop_header
      %s21 = sphi 0, %s25
      %p22 = scmp.ge.s32.totalorder %s21, 4
      %s28 = sphi 0, %s40
      %s29 = sphi 0, %s36
      %s30 = sphi 0, %s28
      %s31 = sphi 0, %s29
      %s32 = sphi 0, %s30
      %s33 = sphi 0, %s31
      %s45 = sphi 0, %s47
      %s48 = sphi 0, %s45
      %s49 = sphi 0, %s48
      %s65 = sphi 0, %s49
      %s71 = sphi 0, %s73
      %s74 = sphi 0, %s71
      %s75 = sphi 0, %s74
      %s91 = sphi 0, %s75
      %s95 = sphi 0, %s95
      %s97 = sphi 0, %s95
      %s98 = sphi 0, %s97
      %s112 = sphi 0, %s98
      %s116 = sphi 0, %s116
      %s118 = sphi 0, %s116
      %s119 = sphi 0, %s118
      %s133 = sphi 0, %s119
      %s137 = sphi 0, %s137
      %s139 = sphi 0, %s137
      %s140 = sphi 0, %s139
      %s154 = sphi 0, %s140
      %s158 = sphi 0, %s158
      %s160 = sphi 0, %s158
      %s161 = sphi 0, %s160
      %s175 = sphi 0, %s161
      %s179 = sphi 0, %s179
      %s181 = sphi 0, %s179
      %s182 = sphi 0, %s181
      %s196 = sphi 0, %s182
      %s204 = sphi 0, %s206
      %s207 = sphi 0, %s204
      %s208 = sphi 0, %s207
      %s224 = sphi 0, %s208
    $region4: #{tpu_custom_call.1} parent=1 // loop_header_branch
      %24 = sbr.rel (%p22) target = $region8
    $region5: #{tpu_custom_call.1} parent=1 // loop_body
      %s26 = ssub.s32 %s21, 1
      %s27 = ssub.s32 %s21, 2
      %s34 = sadd.s32 1, %s29
      %p35 = scmp.ge.s32.totalorder %s34, 1
      %s36 = scalar_select %p35, 0, %s34
      %s37 = sadd.s32 1, %s28
      %s38 = scalar_select %p35, %s37, %s28
      %p39 = scmp.ge.s32.totalorder %s38, 2
      %s40 = scalar_select %p39, 0, %s38
      %s41 = ssub.s32 %s28, %s40
      %s42 = ssub.s32 %s29, %s36
      %s43 = sor.u32 %s41, %s42
      %p44 = scmp.eq.s32.totalorder %s43, 0
      %s46 = sadd.s32 %s45, 1
      %s47 = scalar_select %p44, %s45, %s46
      %p50 = pneg %p44
      %p51 = scmp.eq.s32.totalorder %s21, 1
      %p52 = por %p50, %p51
      %p53 = scmp.ne.s32.totalorder %s45, %s48
      %p54 = scmp.eq.s32.totalorder %s21, 0
      %p55 = por %p53, %p54
      %p56 = scmp.ne.s32.totalorder %s45, %s48
      %p57 = scmp.eq.s32.totalorder %s26, 1
      %p58 = por %p56, %p57
      %p59 = scmp.ne.s32.totalorder %s48, %s49
      %p60 = scmp.eq.s32.totalorder %s26, 0
      %p61 = por %p59, %p60
      %p62 = scmp.ne.s32.totalorder %s48, %s49
      %p63 = scmp.eq.s32.totalorder %s27, 1
      %p64 = por %p62, %p63
      %p66 = scmp.ne.s32.totalorder %s49, %s65
      %p67 = scmp.eq.s32.totalorder %s27, 0
      %p68 = por %p66, %p67
      %s69 = ssub.s32 %s29, %s36
      %p70 = scmp.eq.s32.totalorder %s69, 0
      %s72 = sadd.s32 %s71, 1
      %s73 = scalar_select %p70, %s71, %s72
      %p76 = pneg %p70
      %p77 = scmp.eq.s32.totalorder %s21, 1
      %p78 = por %p76, %p77
      %p79 = scmp.ne.s32.totalorder %s71, %s74
      %p80 = scmp.eq.s32.totalorder %s21, 0
      %p81 = por %p79, %p80
      %p82 = scmp.ne.s32.totalorder %s71, %s74
      %p83 = scmp.eq.s32.totalorder %s26, 1
      %p84 = por %p82, %p83
      %p85 = scmp.ne.s32.totalorder %s74, %s75
      %p86 = scmp.eq.s32.totalorder %s26, 0
      %p87 = por %p85, %p86
      %p88 = scmp.ne.s32.totalorder %s74, %s75
      %p89 = scmp.eq.s32.totalorder %s27, 1
      %p90 = por %p88, %p89
      %p92 = scmp.ne.s32.totalorder %s75, %s91
      %p93 = scmp.eq.s32.totalorder %s27, 0
      %p94 = por %p92, %p93
      %s96 = sadd.s32 %s95, 1
      %p99 = scmp.eq.s32.totalorder %s21, 1
      %p100 = scmp.ne.s32.totalorder %s95, %s97
      %p101 = scmp.eq.s32.totalorder %s21, 0
      %p102 = por %p100, %p101
      %p103 = scmp.ne.s32.totalorder %s95, %s97
      %p104 = scmp.eq.s32.totalorder %s26, 1
      %p105 = por %p103, %p104
      %p106 = scmp.ne.s32.totalorder %s97, %s98
      %p107 = scmp.eq.s32.totalorder %s26, 0
      %p108 = por %p106, %p107
      %p109 = scmp.ne.s32.totalorder %s97, %s98
      %p110 = scmp.eq.s32.totalorder %s27, 1
      %p111 = por %p109, %p110
      %p113 = scmp.ne.s32.totalorder %s98, %s112
      %p114 = scmp.eq.s32.totalorder %s27, 0
      %p115 = por %p113, %p114
      %s117 = sadd.s32 %s116, 1
      %p120 = scmp.eq.s32.totalorder %s21, 1
      %p121 = scmp.ne.s32.totalorder %s116, %s118
      %p122 = scmp.eq.s32.totalorder %s21, 0
      %p123 = por %p121, %p122
      %p124 = scmp.ne.s32.totalorder %s116, %s118
      %p125 = scmp.eq.s32.totalorder %s26, 1
      %p126 = por %p124, %p125
      %p127 = scmp.ne.s32.totalorder %s118, %s119
      %p128 = scmp.eq.s32.totalorder %s26, 0
      %p129 = por %p127, %p128
      %p130 = scmp.ne.s32.totalorder %s118, %s119
      %p131 = scmp.eq.s32.totalorder %s27, 1
      %p132 = por %p130, %p131
      %p134 = scmp.ne.s32.totalorder %s119, %s133
      %p135 = scmp.eq.s32.totalorder %s27, 0
      %p136 = por %p134, %p135
      %s138 = sadd.s32 %s137, 1
      %p141 = scmp.eq.s32.totalorder %s21, 1
      %p142 = scmp.ne.s32.totalorder %s137, %s139
      %p143 = scmp.eq.s32.totalorder %s21, 0
      %p144 = por %p142, %p143
      %p145 = scmp.ne.s32.totalorder %s137, %s139
      %p146 = scmp.eq.s32.totalorder %s26, 1
      %p147 = por %p145, %p146
      %p148 = scmp.ne.s32.totalorder %s139, %s140
      %p149 = scmp.eq.s32.totalorder %s26, 0
      %p150 = por %p148, %p149
      %p151 = scmp.ne.s32.totalorder %s139, %s140
      %p152 = scmp.eq.s32.totalorder %s27, 1
      %p153 = por %p151, %p152
      %p155 = scmp.ne.s32.totalorder %s140, %s154
      %p156 = scmp.eq.s32.totalorder %s27, 0
      %p157 = por %p155, %p156
      %s159 = sadd.s32 %s158, 1
      %p162 = scmp.eq.s32.totalorder %s21, 1
      %p163 = scmp.ne.s32.totalorder %s158, %s160
      %p164 = scmp.eq.s32.totalorder %s21, 0
      %p165 = por %p163, %p164
      %p166 = scmp.ne.s32.totalorder %s158, %s160
      %p167 = scmp.eq.s32.totalorder %s26, 1
      %p168 = por %p166, %p167
      %p169 = scmp.ne.s32.totalorder %s160, %s161
      %p170 = scmp.eq.s32.totalorder %s26, 0
      %p171 = por %p169, %p170
      %p172 = scmp.ne.s32.totalorder %s160, %s161
      %p173 = scmp.eq.s32.totalorder %s27, 1
      %p174 = por %p172, %p173
      %p176 = scmp.ne.s32.totalorder %s161, %s175
      %p177 = scmp.eq.s32.totalorder %s27, 0
      %p178 = por %p176, %p177
      %s180 = sadd.s32 %s179, 1
      %p183 = scmp.eq.s32.totalorder %s21, 1
      %p184 = scmp.ne.s32.totalorder %s179, %s181
      %p185 = scmp.eq.s32.totalorder %s21, 0
      %p186 = por %p184, %p185
      %p187 = scmp.ne.s32.totalorder %s179, %s181
      %p188 = scmp.eq.s32.totalorder %s26, 1
      %p189 = por %p187, %p188
      %p190 = scmp.ne.s32.totalorder %s181, %s182
      %p191 = scmp.eq.s32.totalorder %s26, 0
      %p192 = por %p190, %p191
      %p193 = scmp.ne.s32.totalorder %s181, %s182
      %p194 = scmp.eq.s32.totalorder %s27, 1
      %p195 = por %p193, %p194
      %p197 = scmp.ne.s32.totalorder %s182, %s196
      %p198 = scmp.eq.s32.totalorder %s27, 0
      %p199 = por %p197, %p198
      %s200 = ssub.s32 %s28, %s40
      %s201 = ssub.s32 %s29, %s36
      %s202 = sor.u32 %s200, %s201
      %p203 = scmp.eq.s32.totalorder %s202, 0
      %s205 = sadd.s32 %s204, 1
      %s206 = scalar_select %p203, %s204, %s205
      %p209 = pneg %p203
      %p210 = scmp.eq.s32.totalorder %s21, 1
      %p211 = por %p209, %p210
      %p212 = scmp.ne.s32.totalorder %s204, %s207
      %p213 = scmp.eq.s32.totalorder %s21, 0
      %p214 = por %p212, %p213
      %p215 = scmp.ne.s32.totalorder %s204, %s207
      %p216 = scmp.eq.s32.totalorder %s26, 1
      %p217 = por %p215, %p216
      %p218 = scmp.ne.s32.totalorder %s207, %s208
      %p219 = scmp.eq.s32.totalorder %s26, 0
      %p220 = por %p218, %p219
      %p221 = scmp.ne.s32.totalorder %s207, %s208
      %p222 = scmp.eq.s32.totalorder %s27, 1
      %p223 = por %p221, %p222
      %p225 = scmp.ne.s32.totalorder %s208, %s224
      %p226 = scmp.eq.s32.totalorder %s27, 0
      %p227 = por %p225, %p226
      %p228 = scmp.le.s32.totalorder 1, %s21
      %p229 = scmp.lt.s32.totalorder %s21, 3
      %p230 = pnand %p228, %p229
      %p231 = pneg %p230
      // Predicated region
      $region9: #{tpu_custom_call.1} parent=5 // pred_check
        _
      $region10: #{tpu_custom_call.1} parent=5 // pred_check_branch
        %233 = sbr.rel (%p230) target = $region12
      $region11: #{tpu_custom_call.1} parent=5 // pred_region
        %s234 = ssub.s32 %s21, 1
        // Predicated region
        $region13: #{tpu_custom_call.1} parent=11 // pred_check
          %p235 = pneg %p87
        $region14: #{tpu_custom_call.1} parent=11 // pred_check_branch
          %237 = sbr.rel (%p235) target = $region16
        $region15: #{tpu_custom_call.1} parent=11 // pred_region
          %s239 = ssub.s32 128, 128
          %240 = vsyncadd [#allocation7], %s239
          %s241 = smul.addr %s31, 128
          %s242 = scalar_lea.hbm %s1, %s241
          %s244 = sshll.u32 [#allocation6], 4
          %s245 = int_to_ptr.vmem [resolvable:$true] %s244
          %247 = dma.hbm_to_vmem [thread:$0]  %s242, 128, %s245, [#allocation7]
        $region16: #{tpu_custom_call.1} parent=11 // pred_fallthru
          _
        // Predicated region
        $region17: #{tpu_custom_call.1} parent=11 // pred_check
          %p248 = pneg %p108
        $region18: #{tpu_custom_call.1} parent=11 // pred_check_branch
          %250 = sbr.rel (%p248) target = $region20
        $region19: #{tpu_custom_call.1} parent=11 // pred_region
          _
        $region20: #{tpu_custom_call.1} parent=11 // pred_fallthru
          _
        // Predicated region
        $region21: #{tpu_custom_call.1} parent=11 // pred_check
          %p251 = pneg %p129
        $region22: #{tpu_custom_call.1} parent=11 // pred_check_branch
          %253 = sbr.rel (%p251) target = $region24
        $region23: #{tpu_custom_call.1} parent=11 // pred_region
          _
        $region24: #{tpu_custom_call.1} parent=11 // pred_fallthru
          _
        // Predicated region
        $region25: #{tpu_custom_call.1} parent=11 // pred_check
          %p254 = pneg %p150
        $region26: #{tpu_custom_call.1} parent=11 // pred_check_branch
          %256 = sbr.rel (%p254) target = $region28
        $region27: #{tpu_custom_call.1} parent=11 // pred_region
          _
        $region28: #{tpu_custom_call.1} parent=11 // pred_fallthru
          _
        // Predicated region
        $region29: #{tpu_custom_call.1} parent=11 // pred_check
          %p257 = pneg %p171
        $region30: #{tpu_custom_call.1} parent=11 // pred_check_branch
          %259 = sbr.rel (%p257) target = $region32
        $region31: #{tpu_custom_call.1} parent=11 // pred_region
          %s261 = ssub.s32 2048, 2048
          %262 = vsyncadd [#allocation7], %s261
          %s263 = sshll.u32 [#allocation8], 4
          %s264 = int_to_ptr.vmem [resolvable:$true] %s263
          %269 = dma.hbm_to_vmem [thread:$0]  %s5, 2048, %s264, [#allocation7], 128, 128, 8
        $region32: #{tpu_custom_call.1} parent=11 // pred_fallthru
          _
        // Predicated region
        $region33: #{tpu_custom_call.1} parent=11 // pred_check
          %p270 = pneg %p192
        $region34: #{tpu_custom_call.1} parent=11 // pred_check_branch
          %272 = sbr.rel (%p270) target = $region36
        $region35: #{tpu_custom_call.1} parent=11 // pred_region
          _
        $region36: #{tpu_custom_call.1} parent=11 // pred_fallthru
          _
      $region12: #{tpu_custom_call.1} parent=5 // pred_fallthru
        _
      %p273 = scmp.lt.s32.totalorder %s21, 2
      // Predicated region
      $region37: #{tpu_custom_call.1} parent=5 // pred_check
        %p274 = pneg %p273
      $region38: #{tpu_custom_call.1} parent=5 // pred_check_branch
        %276 = sbr.rel (%p274) target = $region40
      $region39: #{tpu_custom_call.1} parent=5 // pred_region
        // Predicated region
        $region41: #{tpu_custom_call.1} parent=39 // pred_check
          %p277 = pneg %p55
        $region42: #{tpu_custom_call.1} parent=39 // pred_check_branch
          %279 = sbr.rel (%p277) target = $region44
        $region43: #{tpu_custom_call.1} parent=39 // pred_region
          %s280 = sand.u32 %s45, 1
          %s281 = scalar_lea.sflag [#allocation4], %s280
          %s282 = sand.u32 %s45, 1
          %s283 = smul.addr %s282, 8
          %s284 = scalar_lea.vmem [#allocation3], %s283
          %s286 = ssub.s32 128, 128
          %287 = vsyncadd %s281, %s286
          %s288 = sadd.s32 %s29, %s28
          %s289 = smul.addr %s288, 128
          %s290 = scalar_lea.hbm %s0, %s289
          %s292 = sshll.u32 %s284, 4
          %s293 = int_to_ptr.vmem [resolvable:$true] %s292
          %295 = dma.hbm_to_vmem [thread:$0]  %s290, 128, %s293, %s281
        $region44: #{tpu_custom_call.1} parent=39 // pred_fallthru
          _
      $region40: #{tpu_custom_call.1} parent=5 // pred_fallthru
        _
      %p296 = scmp.le.s32.totalorder 1, %s21
      %p297 = scmp.lt.s32.totalorder %s21, 3
      %p298 = pnand %p296, %p297
      %p299 = pneg %p298
      // Predicated region
      $region45: #{tpu_custom_call.1} parent=5 // pred_check
        _
      $region46: #{tpu_custom_call.1} parent=5 // pred_check_branch
        %301 = sbr.rel (%p298) target = $region48
      $region47: #{tpu_custom_call.1} parent=5 // pred_region
        %s302 = ssub.s32 %s21, 1
        %s303 = sand.u32 %s48, 1
        %s304 = scalar_lea.sflag [#allocation4], %s303
        %s305 = sand.u32 %s48, 1
        %s306 = smul.addr %s305, 8
        %s307 = scalar_lea.vmem [#allocation3], %s306
        // Predicated region
        $region49: #{tpu_custom_call.1} parent=47 // pred_check
          %p308 = pneg %p61
        $region50: #{tpu_custom_call.1} parent=47 // pred_check_branch
          %310 = sbr.rel (%p308) target = $region52
        $region51: #{tpu_custom_call.1} parent=47 // pred_region
          %311 = dma.done %s304, 128
        $region52: #{tpu_custom_call.1} parent=47 // pred_fallthru
          _
        // Predicated region
        $region53: #{tpu_custom_call.1} parent=47 // pred_check
          %p312 = pneg %p87
        $region54: #{tpu_custom_call.1} parent=47 // pred_check_branch
          %314 = sbr.rel (%p312) target = $region56
        $region55: #{tpu_custom_call.1} parent=47 // pred_region
          %315 = dma.done [#allocation7], 128
        $region56: #{tpu_custom_call.1} parent=47 // pred_fallthru
          _
        // Predicated region
        $region57: #{tpu_custom_call.1} parent=47 // pred_check
          %p316 = pneg %p171
        $region58: #{tpu_custom_call.1} parent=47 // pred_check_branch
          %318 = sbr.rel (%p316) target = $region60
        $region59: #{tpu_custom_call.1} parent=47 // pred_region
          %319 = dma.done [#allocation7], 2048
        $region60: #{tpu_custom_call.1} parent=47 // pred_fallthru
          _
        %s320 = sand.u32 %s48, 1
        %s321 = scalar_lea.sflag [#allocation4], %s320
        %s322 = sand.u32 %s48, 1
        %s323 = smul.addr %s322, 8
        %s324 = scalar_lea.vmem [#allocation3], %s323
        %p325 = pneg %p61
        %p326 = pneg %p58
        %p327 = pneg %p87
        %p328 = pneg %p84
        %p329 = pneg %p108
        %p330 = pneg %p105
        %p331 = pneg %p129
        %p332 = pneg %p126
        %p333 = pneg %p150
        %p334 = pneg %p147
        %p335 = pneg %p171
        %p336 = pneg %p168
        %p337 = pneg %p192
        %p338 = pneg %p189
        %p339 = pneg %p220
        %p340 = pneg %p217
        %s341 = sand.u32 %s207, 1
        %s342 = scalar_lea.sflag [#allocation5], %s341
        %s343 = sand.u32 %s207, 1
        %s344 = smul.addr %s343, 8
        %s345 = scalar_lea.vmem [#allocation9], %s344
        %v346 = vld [vmem:[#allocation6] sm:$0xff]
        %v347 = vld [vmem:[%s3] sm:$0x1]
        %s348 = sld [smem:[#allocation2]]
        %v349 = vld [vmem:[#allocation8] sm:$0xff]
        %v350 = vld [vmem:[#allocation8 + $0x8] sm:$0xff]
        %v351 = vld [vmem:[#allocation8 + $0x10] sm:$0xff]
        %v352 = vld [vmem:[#allocation8 + $0x18] sm:$0xff]
        %v353 = vld [vmem:[#allocation8 + $0x20] sm:$0xff]
        %v354 = vld [vmem:[#allocation8 + $0x28] sm:$0xff]
        %v355 = vld [vmem:[#allocation8 + $0x30] sm:$0xff]
        %v356 = vld [vmem:[#allocation8 + $0x38] sm:$0xff]
        %v357 = vld [vmem:[#allocation8 + $0x40] sm:$0xff]
        %v358 = vld [vmem:[#allocation8 + $0x48] sm:$0xff]
        %v359 = vld [vmem:[#allocation8 + $0x50] sm:$0xff]
        %v360 = vld [vmem:[#allocation8 + $0x58] sm:$0xff]
        %v361 = vld [vmem:[#allocation8 + $0x60] sm:$0xff]
        %v362 = vld [vmem:[#allocation8 + $0x68] sm:$0xff]
        %v363 = vld [vmem:[#allocation8 + $0x70] sm:$0xff]
        %v364 = vld [vmem:[#allocation8 + $0x78] sm:$0xff]
        %v365 = vld [vmem:[%s6] sm:$0x1]
        %v366 = vld [vmem:[%s307] sm:$0xff]
        %v367 = vadd.f32 %v366, %v346
        %v368 = vld [vmem:[%s2] sm:$0x1]
        %v369 = vlaneseq
        %v370 = vshrl.u32 %v369, 7
        %v371 = vsub.s32 0, %v370
        %v372 = vrot.slane %v368, %v371
        %v373 = vadd.f32 %v367, %v372
        %v375 = vlaneseq
        %v376 = vshrl.u32 %v375, 7
        %v377 = vsub.s32 0, %v376
        %v378 = vrot.slane %v347, %v377
        %v380 = vmul.f32 %v373, %v378
        %381 = vadd.xlane.f32.xlu0 %v380
        %v382 = vpop.xlane.xlu0 %381
        %v383 = vstv %s348
        %v384 = vadd.f32 %v382, %v383
        %v385 = vxor.u32 %v384, 2147483648
        %v386 = vmul.f32 %v385, 1.442695
        %v387 = vpow.pop %v386
        %v388 = vadd.f32 %v387, 1.0
        %v389 = vrcp.pop %v388
        %v390 = vmul.f32 1.0, %v389
        %vm391 = vcmp.lt.f32.partialorder 0.0, 1.0
        %v392 = vsel %vm391, 1, 0
        %v393 = vcvt.s32.f32 %v392
        %v394 = vmul.f32 %v390, %v393
        %v395 = vadd.f32 %v394, 0.0
        %vm396 = vcmp.gt.f32.partialorder %v395, 0.9
        %v397 = vsel %vm396, 1, 0
        %v398 = vcvt.s32.f32 %v397
        %v399 = vmul.f32 %v398, %v393
        %vm400 = vcmp.le.f32.partialorder %v395, 0.9
        %v401 = vsel %vm400, 1, 0
        %v402 = vcvt.s32.f32 %v401
        %v403 = vmul.f32 %v402, %v393
        %v404 = vmul.f32 %v390, %v403
        %v405 = vadd.f32 %v404, 0.0
        %v406 = vsub.f32 1.0, %v405
        %v407 = vmul.f32 %v399, %v406
        %v408 = vadd.f32 %v407, 0.0
        %v409 = vmul.f32 %v399, %v408
        %v410 = vadd.f32 %v405, %v409
        %v411 = vadd.f32 %v404, %v409
        %v413 = vlaneseq
        %v414 = vshrl.u32 %v413, 7
        %v415 = vsub.s32 0, %v414
        %v416 = vrot.slane %v365, %v415
        %418 = vmatprep.subr.mxu0 0.0
        %419 = vmatpush1.msra.mxu0 %v364
        %420 = vmatprep.subr.mxu0 0.0
        %421 = vmatpush1.msra.mxu0 %v363
        %422 = vmatprep.subr.mxu0 0.0
        %423 = vmatpush1.msra.mxu0 %v362
        %424 = vmatprep.subr.mxu0 0.0
        %425 = vmatpush1.msra.mxu0 %v361
        %426 = vmatprep.subr.mxu0 0.0
        %427 = vmatpush1.msra.mxu0 %v360
        %428 = vmatprep.subr.mxu0 0.0
        %429 = vmatpush1.msra.mxu0 %v359
        %430 = vmatprep.subr.mxu0 0.0
        %431 = vmatpush1.msra.mxu0 %v358
        %432 = vmatprep.subr.mxu0 0.0
        %433 = vmatpush1.msra.mxu0 %v357
        %434 = vmatprep.subr.mxu0 0.0
        %435 = vmatpush1.msra.mxu0 %v356
        %436 = vmatprep.subr.mxu0 0.0
        %437 = vmatpush1.msra.mxu0 %v355
        %438 = vmatprep.subr.mxu0 0.0
        %439 = vmatpush1.msra.mxu0 %v354
        %440 = vmatprep.subr.mxu0 0.0
        %441 = vmatpush1.msra.mxu0 %v353
        %442 = vmatprep.subr.mxu0 0.0
        %443 = vmatpush1.msra.mxu0 %v352
        %444 = vmatprep.subr.mxu0 0.0
        %445 = vmatpush1.msra.mxu0 %v351
        %446 = vmatprep.subr.mxu0 0.0
        %447 = vmatpush1.msra.mxu0 %v350
        %448 = vmatprep.subr.mxu0 0.0
        %449 = vmatpush1.msra.mxu0 %v349
        %450 = vmatprep.subr.mxu0 0.0
        %451 = vmatpush2.msra.mxu0 0.0
        %452 = vmatprep.subr.mxu0 0.0
        %453 = vmatpush2.msra.mxu0 0.0
        %454 = vmatprep.subr.mxu0 0.0
        %455 = vmatpush2.msra.mxu0 0.0
        %456 = vmatprep.subr.mxu0 0.0
        %457 = vmatpush2.msra.mxu0 0.0
        %458 = vmatprep.subr.mxu0 0.0
        %459 = vmatpush2.msra.mxu0 0.0
        %460 = vmatprep.subr.mxu0 0.0
        %461 = vmatpush2.msra.mxu0 0.0
        %462 = vmatprep.subr.mxu0 0.0
        %463 = vmatpush2.msra.mxu0 0.0
        %464 = vmatprep.subr.mxu0 0.0
        %465 = vmatpush2.msra.mxu0 0.0
        %466 = vmatprep.subr.mxu0 0.0
        %467 = vmatpush2.msra.mxu0 0.0
        %468 = vmatprep.subr.mxu0 0.0
        %469 = vmatpush2.msra.mxu0 0.0
        %470 = vmatprep.subr.mxu0 0.0
        %471 = vmatpush2.msra.mxu0 0.0
        %472 = vmatprep.subr.mxu0 0.0
        %473 = vmatpush2.msra.mxu0 0.0
        %474 = vmatprep.subr.mxu0 0.0
        %475 = vmatpush2.msra.mxu0 0.0
        %476 = vmatprep.subr.mxu0 0.0
        %477 = vmatpush2.msra.mxu0 0.0
        %478 = vmatprep.subr.mxu0 0.0
        %479 = vmatpush2.msra.mxu0 0.0
        %480 = vmatprep.subr.mxu0 0.0
        %481 = vmatpush2.msra.mxu0 0.0
        %482 = vmatprep.mubr.f32.mxu0 0.0
        %483 = vmatmul.mubr.f32.gmra.mxu0 %v373
        %v484 = vpop.f32.mrf.mxu0
        %v485 = vadd.f32 %v416, %v484
        %v486 = vpop.f32.mrf.mxu0
        %487 = vdwg.mxu0
        %v488 = vmul.f32 %v485, %v411
        %v489 = vsub.f32 1.0, %v411
        %v490 = vmul.f32 %v489, 0.0
        %v491 = vadd.f32 %v488, %v490
        %v492 = vadd.f32 %v485, %v346
        %v493 = vld [vmem:[%s2 + $0x1] sm:$0x1]
        %v494 = vlaneseq
        %v495 = vshrl.u32 %v494, 7
        %v496 = vsub.s32 0, %v495
        %v497 = vrot.slane %v493, %v496
        %v498 = vadd.f32 %v492, %v497
        %v499 = vmul.f32 %v498, %v378
        %500 = vadd.xlane.f32.xlu0 %v499
        %v501 = vpop.xlane.xlu0 %500
        %v502 = vadd.f32 %v501, %v383
        %v503 = vxor.u32 %v502, 2147483648
        %v504 = vmul.f32 %v503, 1.442695
        %v505 = vpow.pop %v504
        %v506 = vadd.f32 %v505, 1.0
        %v507 = vrcp.pop %v506
        %v508 = vmul.f32 1.0, %v507
        %vm509 = vcmp.lt.f32.partialorder %v410, 1.0
        %v510 = vsel %vm509, 1, 0
        %v511 = vcvt.s32.f32 %v510
        %v512 = vmul.f32 %v508, %v511
        %v513 = vadd.f32 %v410, %v512
        %vm514 = vcmp.gt.f32.partialorder %v513, 0.9
        %v515 = vsel %vm514, 1, 0
        %v516 = vcvt.s32.f32 %v515
        %v517 = vmul.f32 %v516, %v511
        %vm518 = vcmp.le.f32.partialorder %v513, 0.9
        %v519 = vsel %vm518, 1, 0
        %v520 = vcvt.s32.f32 %v519
        %v521 = vmul.f32 %v520, %v511
        %v522 = vmul.f32 %v508, %v521
        %v523 = vadd.f32 %v410, %v522
        %v524 = vsub.f32 1.0, %v523
        %v525 = vmul.f32 %v517, %v524
        %v526 = vadd.f32 %v408, %v525
        %v527 = vmul.f32 %v517, %v526
        %v528 = vadd.f32 %v523, %v527
        %v529 = vadd.f32 %v522, %v527
        %530 = vmatprep.subr.mxu0 0.0
        %531 = vmatpush1.msra.mxu0 %v364
        %532 = vmatprep.subr.mxu0 0.0
        %533 = vmatpush1.msra.mxu0 %v363
        %534 = vmatprep.subr.mxu0 0.0
        %535 = vmatpush1.msra.mxu0 %v362
        %536 = vmatprep.subr.mxu0 0.0
        %537 = vmatpush1.msra.mxu0 %v361
        %538 = vmatprep.subr.mxu0 0.0
        %539 = vmatpush1.msra.mxu0 %v360
        %540 = vmatprep.subr.mxu0 0.0
        %541 = vmatpush1.msra.mxu0 %v359
        %542 = vmatprep.subr.mxu0 0.0
        %543 = vmatpush1.msra.mxu0 %v358
        %544 = vmatprep.subr.mxu0 0.0
        %545 = vmatpush1.msra.mxu0 %v357
        %546 = vmatprep.subr.mxu0 0.0
        %547 = vmatpush1.msra.mxu0 %v356
        %548 = vmatprep.subr.mxu0 0.0
        %549 = vmatpush1.msra.mxu0 %v355
        %550 = vmatprep.subr.mxu0 0.0
        %551 = vmatpush1.msra.mxu0 %v354
        %552 = vmatprep.subr.mxu0 0.0
        %553 = vmatpush1.msra.mxu0 %v353
        %554 = vmatprep.subr.mxu0 0.0
        %555 = vmatpush1.msra.mxu0 %v352
        %556 = vmatprep.subr.mxu0 0.0
        %557 = vmatpush1.msra.mxu0 %v351
        %558 = vmatprep.subr.mxu0 0.0
        %559 = vmatpush1.msra.mxu0 %v350
        %560 = vmatprep.subr.mxu0 0.0
        %561 = vmatpush1.msra.mxu0 %v349
        %562 = vmatprep.subr.mxu0 0.0
        %563 = vmatpush2.msra.mxu0 0.0
        %564 = vmatprep.subr.mxu0 0.0
        %565 = vmatpush2.msra.mxu0 0.0
        %566 = vmatprep.subr.mxu0 0.0
        %567 = vmatpush2.msra.mxu0 0.0
        %568 = vmatprep.subr.mxu0 0.0
        %569 = vmatpush2.msra.mxu0 0.0
        %570 = vmatprep.subr.mxu0 0.0
        %571 = vmatpush2.msra.mxu0 0.0
        %572 = vmatprep.subr.mxu0 0.0
        %573 = vmatpush2.msra.mxu0 0.0
        %574 = vmatprep.subr.mxu0 0.0
        %575 = vmatpush2.msra.mxu0 0.0
        %576 = vmatprep.subr.mxu0 0.0
        %577 = vmatpush2.msra.mxu0 0.0
        %578 = vmatprep.subr.mxu0 0.0
        %579 = vmatpush2.msra.mxu0 0.0
        %580 = vmatprep.subr.mxu0 0.0
        %581 = vmatpush2.msra.mxu0 0.0
        %582 = vmatprep.subr.mxu0 0.0
        %583 = vmatpush2.msra.mxu0 0.0
        %584 = vmatprep.subr.mxu0 0.0
        %585 = vmatpush2.msra.mxu0 0.0
        %586 = vmatprep.subr.mxu0 0.0
        %587 = vmatpush2.msra.mxu0 0.0
        %588 = vmatprep.subr.mxu0 0.0
        %589 = vmatpush2.msra.mxu0 0.0
        %590 = vmatprep.subr.mxu0 0.0
        %591 = vmatpush2.msra.mxu0 0.0
        %592 = vmatprep.subr.mxu0 0.0
        %593 = vmatpush2.msra.mxu0 0.0
        %594 = vmatprep.mubr.f32.mxu0 0.0
        %595 = vmatmul.mubr.f32.gmra.mxu0 %v498
        %v596 = vpop.f32.mrf.mxu0
        %v597 = vadd.f32 %v416, %v596
        %v598 = vpop.f32.mrf.mxu0
        %599 = vdwg.mxu0
        %v600 = vmul.f32 %v597, %v529
        %v601 = vsub.f32 1.0, %v529
        %v602 = vmul.f32 %v491, %v601
        %v603 = vadd.f32 %v600, %v602
        %v604 = vadd.f32 %v597, %v346
        %v605 = vld [vmem:[%s2 + $0x2] sm:$0x1]
        %v606 = vlaneseq
        %v607 = vshrl.u32 %v606, 7
        %v608 = vsub.s32 0, %v607
        %v609 = vrot.slane %v605, %v608
        %v610 = vadd.f32 %v604, %v609
        %v611 = vmul.f32 %v610, %v378
        %612 = vadd.xlane.f32.xlu0 %v611
        %v613 = vpop.xlane.xlu0 %612
        %v614 = vadd.f32 %v613, %v383
        %v615 = vxor.u32 %v614, 2147483648
        %v616 = vmul.f32 %v615, 1.442695
        %v617 = vpow.pop %v616
        %v618 = vadd.f32 %v617, 1.0
        %v619 = vrcp.pop %v618
        %v620 = vmul.f32 1.0, %v619
        %vm621 = vcmp.lt.f32.partialorder %v528, 1.0
        %v622 = vsel %vm621, 1, 0
        %v623 = vcvt.s32.f32 %v622
        %v624 = vmul.f32 %v620, %v623
        %v625 = vadd.f32 %v528, %v624
        %vm626 = vcmp.gt.f32.partialorder %v625, 0.9
        %v627 = vsel %vm626, 1, 0
        %v628 = vcvt.s32.f32 %v627
        %v629 = vmul.f32 %v628, %v623
        %vm630 = vcmp.le.f32.partialorder %v625, 0.9
        %v631 = vsel %vm630, 1, 0
        %v632 = vcvt.s32.f32 %v631
        %v633 = vmul.f32 %v632, %v623
        %v634 = vmul.f32 %v620, %v633
        %v635 = vadd.f32 %v528, %v634
        %v636 = vsub.f32 1.0, %v635
        %v637 = vmul.f32 %v629, %v636
        %v638 = vadd.f32 %v526, %v637
        %v639 = vmul.f32 %v629, %v638
        %v640 = vadd.f32 %v635, %v639
        %v641 = vadd.f32 %v634, %v639
        %642 = vmatprep.subr.mxu0 0.0
        %643 = vmatpush1.msra.mxu0 %v364
        %644 = vmatprep.subr.mxu0 0.0
        %645 = vmatpush1.msra.mxu0 %v363
        %646 = vmatprep.subr.mxu0 0.0
        %647 = vmatpush1.msra.mxu0 %v362
        %648 = vmatprep.subr.mxu0 0.0
        %649 = vmatpush1.msra.mxu0 %v361
        %650 = vmatprep.subr.mxu0 0.0
        %651 = vmatpush1.msra.mxu0 %v360
        %652 = vmatprep.subr.mxu0 0.0
        %653 = vmatpush1.msra.mxu0 %v359
        %654 = vmatprep.subr.mxu0 0.0
        %655 = vmatpush1.msra.mxu0 %v358
        %656 = vmatprep.subr.mxu0 0.0
        %657 = vmatpush1.msra.mxu0 %v357
        %658 = vmatprep.subr.mxu0 0.0
        %659 = vmatpush1.msra.mxu0 %v356
        %660 = vmatprep.subr.mxu0 0.0
        %661 = vmatpush1.msra.mxu0 %v355
        %662 = vmatprep.subr.mxu0 0.0
        %663 = vmatpush1.msra.mxu0 %v354
        %664 = vmatprep.subr.mxu0 0.0
        %665 = vmatpush1.msra.mxu0 %v353
        %666 = vmatprep.subr.mxu0 0.0
        %667 = vmatpush1.msra.mxu0 %v352
        %668 = vmatprep.subr.mxu0 0.0
        %669 = vmatpush1.msra.mxu0 %v351
        %670 = vmatprep.subr.mxu0 0.0
        %671 = vmatpush1.msra.mxu0 %v350
        %672 = vmatprep.subr.mxu0 0.0
        %673 = vmatpush1.msra.mxu0 %v349
        %674 = vmatprep.subr.mxu0 0.0
        %675 = vmatpush2.msra.mxu0 0.0
        %676 = vmatprep.subr.mxu0 0.0
        %677 = vmatpush2.msra.mxu0 0.0
        %678 = vmatprep.subr.mxu0 0.0
        %679 = vmatpush2.msra.mxu0 0.0
        %680 = vmatprep.subr.mxu0 0.0
        %681 = vmatpush2.msra.mxu0 0.0
        %682 = vmatprep.subr.mxu0 0.0
        %683 = vmatpush2.msra.mxu0 0.0
        %684 = vmatprep.subr.mxu0 0.0
        %685 = vmatpush2.msra.mxu0 0.0
        %686 = vmatprep.subr.mxu0 0.0
        %687 = vmatpush2.msra.mxu0 0.0
        %688 = vmatprep.subr.mxu0 0.0
        %689 = vmatpush2.msra.mxu0 0.0
        %690 = vmatprep.subr.mxu0 0.0
        %691 = vmatpush2.msra.mxu0 0.0
        %692 = vmatprep.subr.mxu0 0.0
        %693 = vmatpush2.msra.mxu0 0.0
        %694 = vmatprep.subr.mxu0 0.0
        %695 = vmatpush2.msra.mxu0 0.0
        %696 = vmatprep.subr.mxu0 0.0
        %697 = vmatpush2.msra.mxu0 0.0
        %698 = vmatprep.subr.mxu0 0.0
        %699 = vmatpush2.msra.mxu0 0.0
        %700 = vmatprep.subr.mxu0 0.0
        %701 = vmatpush2.msra.mxu0 0.0
        %702 = vmatprep.subr.mxu0 0.0
        %703 = vmatpush2.msra.mxu0 0.0
        %704 = vmatprep.subr.mxu0 0.0
        %705 = vmatpush2.msra.mxu0 0.0
        %706 = vmatprep.mubr.f32.mxu0 0.0
        %707 = vmatmul.mubr.f32.gmra.mxu0 %v610
        %v708 = vpop.f32.mrf.mxu0
        %v709 = vadd.f32 %v416, %v708
        %v710 = vpop.f32.mrf.mxu0
        %711 = vdwg.mxu0
        %v712 = vmul.f32 %v709, %v641
        %v713 = vsub.f32 1.0, %v641
        %v714 = vmul.f32 %v603, %v713
        %v715 = vadd.f32 %v712, %v714
        %v716 = vadd.f32 %v709, %v346
        %v717 = vld [vmem:[%s2 + $0x3] sm:$0x1]
        %v718 = vlaneseq
        %v719 = vshrl.u32 %v718, 7
        %v720 = vsub.s32 0, %v719
        %v721 = vrot.slane %v717, %v720
        %v722 = vadd.f32 %v716, %v721
        %v723 = vmul.f32 %v722, %v378
        %724 = vadd.xlane.f32.xlu0 %v723
        %v725 = vpop.xlane.xlu0 %724
        %v726 = vadd.f32 %v725, %v383
        %v727 = vxor.u32 %v726, 2147483648
        %v728 = vmul.f32 %v727, 1.442695
        %v729 = vpow.pop %v728
        %v730 = vadd.f32 %v729, 1.0
        %v731 = vrcp.pop %v730
        %v732 = vmul.f32 1.0, %v731
        %vm733 = vcmp.lt.f32.partialorder %v640, 1.0
        %v734 = vsel %vm733, 1, 0
        %v735 = vcvt.s32.f32 %v734
        %v736 = vmul.f32 %v732, %v735
        %v737 = vadd.f32 %v640, %v736
        %vm738 = vcmp.gt.f32.partialorder %v737, 0.9
        %v739 = vsel %vm738, 1, 0
        %v740 = vcvt.s32.f32 %v739
        %v741 = vmul.f32 %v740, %v735
        %vm742 = vcmp.le.f32.partialorder %v737, 0.9
        %v743 = vsel %vm742, 1, 0
        %v744 = vcvt.s32.f32 %v743
        %v745 = vmul.f32 %v744, %v735
        %v746 = vmul.f32 %v732, %v745
        %v747 = vadd.f32 %v640, %v746
        %v748 = vsub.f32 1.0, %v747
        %v749 = vmul.f32 %v741, %v748
        %v750 = vadd.f32 %v638, %v749
        %v751 = vmul.f32 %v741, %v750
        %v752 = vadd.f32 %v746, %v751
        %753 = vmatprep.subr.mxu0 0.0
        %754 = vmatpush1.msra.mxu0 %v364
        %755 = vmatprep.subr.mxu0 0.0
        %756 = vmatpush1.msra.mxu0 %v363
        %757 = vmatprep.subr.mxu0 0.0
        %758 = vmatpush1.msra.mxu0 %v362
        %759 = vmatprep.subr.mxu0 0.0
        %760 = vmatpush1.msra.mxu0 %v361
        %761 = vmatprep.subr.mxu0 0.0
        %762 = vmatpush1.msra.mxu0 %v360
        %763 = vmatprep.subr.mxu0 0.0
        %764 = vmatpush1.msra.mxu0 %v359
        %765 = vmatprep.subr.mxu0 0.0
        %766 = vmatpush1.msra.mxu0 %v358
        %767 = vmatprep.subr.mxu0 0.0
        %768 = vmatpush1.msra.mxu0 %v357
        %769 = vmatprep.subr.mxu0 0.0
        %770 = vmatpush1.msra.mxu0 %v356
        %771 = vmatprep.subr.mxu0 0.0
        %772 = vmatpush1.msra.mxu0 %v355
        %773 = vmatprep.subr.mxu0 0.0
        %774 = vmatpush1.msra.mxu0 %v354
        %775 = vmatprep.subr.mxu0 0.0
        %776 = vmatpush1.msra.mxu0 %v353
        %777 = vmatprep.subr.mxu0 0.0
        %778 = vmatpush1.msra.mxu0 %v352
        %779 = vmatprep.subr.mxu0 0.0
        %780 = vmatpush1.msra.mxu0 %v351
        %781 = vmatprep.subr.mxu0 0.0
        %782 = vmatpush1.msra.mxu0 %v350
        %783 = vmatprep.subr.mxu0 0.0
        %784 = vmatpush1.msra.mxu0 %v349
        %785 = vmatprep.subr.mxu0 0.0
        %786 = vmatpush2.msra.mxu0 0.0
        %787 = vmatprep.subr.mxu0 0.0
        %788 = vmatpush2.msra.mxu0 0.0
        %789 = vmatprep.subr.mxu0 0.0
        %790 = vmatpush2.msra.mxu0 0.0
        %791 = vmatprep.subr.mxu0 0.0
        %792 = vmatpush2.msra.mxu0 0.0
        %793 = vmatprep.subr.mxu0 0.0
        %794 = vmatpush2.msra.mxu0 0.0
        %795 = vmatprep.subr.mxu0 0.0
        %796 = vmatpush2.msra.mxu0 0.0
        %797 = vmatprep.subr.mxu0 0.0
        %798 = vmatpush2.msra.mxu0 0.0
        %799 = vmatprep.subr.mxu0 0.0
        %800 = vmatpush2.msra.mxu0 0.0
        %801 = vmatprep.subr.mxu0 0.0
        %802 = vmatpush2.msra.mxu0 0.0
        %803 = vmatprep.subr.mxu0 0.0
        %804 = vmatpush2.msra.mxu0 0.0
        %805 = vmatprep.subr.mxu0 0.0
        %806 = vmatpush2.msra.mxu0 0.0
        %807 = vmatprep.subr.mxu0 0.0
        %808 = vmatpush2.msra.mxu0 0.0
        %809 = vmatprep.subr.mxu0 0.0
        %810 = vmatpush2.msra.mxu0 0.0
        %811 = vmatprep.subr.mxu0 0.0
        %812 = vmatpush2.msra.mxu0 0.0
        %813 = vmatprep.subr.mxu0 0.0
        %814 = vmatpush2.msra.mxu0 0.0
        %815 = vmatprep.subr.mxu0 0.0
        %816 = vmatpush2.msra.mxu0 0.0
        %817 = vmatprep.mubr.f32.mxu0 0.0
        %818 = vmatmul.mubr.f32.gmra.mxu0 %v722
        %v819 = vpop.f32.mrf.mxu0
        %v820 = vadd.f32 %v416, %v819
        %v821 = vpop.f32.mrf.mxu0
        %822 = vdwg.mxu0
        %v823 = vmul.f32 %v820, %v752
        %v824 = vsub.f32 1.0, %v752
        %v825 = vmul.f32 %v715, %v824
        %v826 = vadd.f32 %v823, %v825
        %827 = vst [vmem:[%s345] sm:$0xff] %v826
        %s828 = sand.u32 %s207, 1
        %s829 = scalar_lea.sflag [#allocation5], %s828
        %s830 = sand.u32 %s207, 1
        %s831 = smul.addr %s830, 8
        %s832 = scalar_lea.vmem [#allocation9], %s831
        // Predicated region
        $region61: #{tpu_custom_call.1} parent=47 // pred_check
          %p833 = pneg %p217
        $region62: #{tpu_custom_call.1} parent=47 // pred_check_branch
          %835 = sbr.rel (%p833) target = $region64
        $region63: #{tpu_custom_call.1} parent=47 // pred_region
          %s837 = ssub.s32 128, 128
          %838 = vsyncadd %s829, %s837
          %s839 = sadd.s32 %s31, %s30
          %s840 = smul.addr %s839, 128
          %s841 = scalar_lea.hbm %s7, %s840
          %s843 = sshll.u32 %s832, 4
          %s844 = int_to_ptr.vmem [resolvable:$true] %s843
          %846 = dma.vmem_to_hbm [thread:$0]  %s844, 128, %s841, %s829
        $region64: #{tpu_custom_call.1} parent=47 // pred_fallthru
          _
      $region48: #{tpu_custom_call.1} parent=5 // pred_fallthru
        _
      %p847 = scmp.le.s32.totalorder 2, %s21
      // Predicated region
      $region65: #{tpu_custom_call.1} parent=5 // pred_check
        %p848 = pneg %p847
      $region66: #{tpu_custom_call.1} parent=5 // pred_check_branch
        %850 = sbr.rel (%p848) target = $region68
      $region67: #{tpu_custom_call.1} parent=5 // pred_region
        %s851 = ssub.s32 %s21, 2
        // Predicated region
        $region69: #{tpu_custom_call.1} parent=67 // pred_check
          %p852 = pneg %p223
        $region70: #{tpu_custom_call.1} parent=67 // pred_check_branch
          %854 = sbr.rel (%p852) target = $region72
        $region71: #{tpu_custom_call.1} parent=67 // pred_region
          %s855 = sand.u32 %s208, 1
          %s856 = scalar_lea.sflag [#allocation5], %s855
          %s857 = sand.u32 %s208, 1
          %s858 = smul.addr %s857, 8
          %s859 = scalar_lea.vmem [#allocation9], %s858
          %860 = dma.done %s856, 128
        $region72: #{tpu_custom_call.1} parent=67 // pred_fallthru
          _
      $region68: #{tpu_custom_call.1} parent=5 // pred_fallthru
        _
    $region6: #{tpu_custom_call.1} parent=1 // loop_footer
      %s25 = sadd.s32 1, %s21
    $region7: #{tpu_custom_call.1} parent=1 // loop_footer_branch
      %20 = sbr.rel target = $region3
    $region8: #{tpu_custom_call.1} parent=1 // loop_exit
      _
    %861 = vsyncpa [#allocation4], 1
    %s862 = scalar_lea.sflag [#allocation4], 1
    %863 = vsyncpa %s862, 1
    %864 = vsyncpa [#allocation7], 1
    %865 = vsyncpa [#allocation5], 1
    %s866 = scalar_lea.sflag [#allocation5], 1
    %867 = vsyncpa %s866, 1

</llo_original>
